<compile_context>
chip_gen: v5e
topology: v5e:2x2
jax: 0.10.0
libtpu: 0.0.40
codegen_flags: <defaults>
</compile_context>

<pallas_src>
import jax
import jax.numpy as jnp
from jax.experimental import pallas as pl
from jax.experimental.pallas import tpu as pltpu

LANE = 128
MAX_BLOCK_ROWS = 8192          # 8192 x 128 f32 = 4 MiB per block
VMEM_LIMIT_BYTES = 32 * 1024 * 1024   # > 16 MiB live f32 double-buffers; safe on v5e/v6e/v7x


def _scale_kernel(c_ref, x_ref, o_ref):
    c = c_ref[0, 0]                      # f32 scalar from SMEM (single sld)
    x = x_ref[...]
    if jnp.issubdtype(x_ref.dtype, jnp.floating):
        # Multiply in the input dtype (bf16 stays packed on v6e/v7x VPU).
        o_ref[...] = x * c.astype(x_ref.dtype)
    else:
        # PyTorch float-scalar * int-tensor promotes to float.
        o_ref[...] = (x.astype(jnp.float32) * c).astype(o_ref.dtype)


def _round_up(x: int, m: int) -> int:
    return ((x + m - 1) // m) * m


def _pick_block_rows(rows: int, min_mult: int) -> int:
    """Largest-practical block; grid kept even (>=4) for v7x 2-TC sharding."""
    if rows <= MAX_BLOCK_ROWS:
        return rows                      # single full-extent block, grid=(1,)
    g = pl.cdiv(rows, MAX_BLOCK_ROWS)
    if g % 2:
        g = max(4, g + 1)                # even grid splits cleanly across 2 TCs
    block = pl.cdiv(rows, g)             # balanced block sizes across steps
    return max(_round_up(block, min_mult), min_mult)


def scale_by_constant(x: jax.Array, constant: float) -> jax.Array:
    """Pallas implementation of ScaleByConstant.forward: constant * x."""
    orig_shape = x.shape
    total = x.size
    in_dtype = jnp.dtype(x.dtype)
    is_float = jnp.issubdtype(in_dtype, jnp.floating)
    out_dtype = in_dtype if is_float else jnp.dtype(jnp.float32)

    # Flatten to a lane-dense [rows, 128] slab. Common case: metadata-only reshape.
    ragged = (total % LANE) != 0
    if not ragged:
        rows = total // LANE
        x2d = x.reshape(rows, LANE)
    else:
        # Rare path: pad the flat tail so the lane axis is dense.
        rows = pl.cdiv(total, LANE)
        x2d = jnp.pad(x.reshape(-1), (0, rows * LANE - total)).reshape(rows, LANE)

    # Minimum sublane packing per row-block (f32: 8, bf16/f16: 16, int8/fp8: 32).
    min_mult = max(8, 32 // max(1, in_dtype.itemsize))
    block_rows = _pick_block_rows(rows, min_mult)
    grid = (pl.cdiv(rows, block_rows),)   # last block may be partial; Pallas masks it.

    c_arr = jnp.full((1, 1), constant, dtype=jnp.float32)

    cost = pl.CostEstimate(
        flops=total,
        transcendentals=0,
        bytes_accessed=total * (in_dtype.itemsize + out_dtype.itemsize),
    )

    out2d = pl.pallas_call(
        _scale_kernel,
        out_shape=jax.ShapeDtypeStruct((rows, LANE), out_dtype),
        grid=grid,
        in_specs=[
            pl.BlockSpec(memory_space=pltpu.MemorySpace.SMEM),       # constant
            pl.BlockSpec((block_rows, LANE), lambda i: (i, 0)),      # x tile
        ],
        out_specs=pl.BlockSpec((block_rows, LANE), lambda i: (i, 0)),
        compiler_params=pltpu.CompilerParams(
            dimension_semantics=("parallel",),   # shards across TCs on v7x when grid > 1
            vmem_limit_bytes=VMEM_LIMIT_BYTES,
        ),
        cost_estimate=cost,
    )(c_arr, x2d)

    if ragged:
        return out2d.reshape(-1)[:total].reshape(orig_shape)
    return out2d.reshape(orig_shape)


if __name__ == "__main__":
    key = jax.random.PRNGKey(0)
    constant = 2.5  # deterministic "parameter" of the module

    # Main case: small f32 input (lane-aligned), single block, grid=(1,).
    x = jax.random.normal(key, (2, 4, 16, 16), dtype=jnp.float32)
    y = scale_by_constant(x, constant)
    jax.block_until_ready(y)
    assert y.shape == x.shape and y.dtype == x.dtype
    assert jnp.allclose(y, constant * x, atol=1e-6, rtol=1e-6)

    # bf16 path: multiply happens in bf16 (matches PyTorch float-scalar * bf16).
    xb = x.astype(jnp.bfloat16)
    yb = scale_by_constant(xb, constant)
    jax.block_until_ready(yb)
    assert yb.dtype == jnp.bfloat16
    assert jnp.allclose(yb.astype(jnp.float32),
                        (xb * jnp.asarray(constant, jnp.bfloat16)).astype(jnp.float32),
                        atol=1e-2, rtol=1e-2)

    # Ragged path: total % 128 != 0 exercises the pad/slice branch.
    xr = jax.random.normal(jax.random.PRNGKey(1), (3, 5, 7), dtype=jnp.float32)
    yr = scale_by_constant(xr, constant)
    jax.block_until_ready(yr)
    assert yr.shape == xr.shape
    assert jnp.allclose(yr, constant * xr, atol=1e-6, rtol=1e-6)

    print("KERNEL_OK")
</pallas_src>

<mosaic_0001>
module attributes {stable_mosaic.version = 11 : i64} {
  func.func @_scale_kernel(%arg0: i32, %arg1: memref<1x1xf32, #tpu.memory_space<smem>>, %arg2: memref<16x128xf32, #tpu.memory_space<vmem>>, %arg3: memref<16x128xf32, #tpu.memory_space<vmem>>) attributes {dimension_semantics = [#tpu.dimension_semantics<parallel>], iteration_bounds = array<i64: 1>, scalar_prefetch = 0 : i64, scratch_operands = 0 : i64, tpu.core_type = #tpu.core_type<tc>, window_params = [{transform_indices = @transform_0, window_bounds = array<i64: 1, 1>}, {transform_indices = @transform_1, window_bounds = array<i64: 16, 128>}, {transform_indices = @transform_2, window_bounds = array<i64: 16, 128>}]} {
    %c0 = arith.constant 0 : index
    %c0_0 = arith.constant 0 : index
    %0 = memref.load %arg1[%c0, %c0_0] : memref<1x1xf32, #tpu.memory_space<smem>>
    %c0_1 = arith.constant 0 : index
    %c0_2 = arith.constant 0 : index
    %1 = vector.load %arg2[%c0_1, %c0_2] : memref<16x128xf32, #tpu.memory_space<vmem>>, vector<16x128xf32>
    %2 = vector.broadcast %0 : f32 to vector<16x128xf32>
    %3 = arith.mulf %1, %2 : vector<16x128xf32>
    %c0_3 = arith.constant 0 : index
    %c0_4 = arith.constant 0 : index
    %4 = vector.load %arg3[%c0_3, %c0_4] : memref<16x128xf32, #tpu.memory_space<vmem>>, vector<16x128xf32>
    tpu.vector_store %arg3[%c0_3, %c0_4], %3 {strides = array<i32>} : memref<16x128xf32, #tpu.memory_space<vmem>>, vector<16x128xf32>,
    return
  }
  func.func @transform_0(%arg0: i32) -> (i32, i32) {
    %c0_i32 = arith.constant 0 : i32
    %c0_i32_0 = arith.constant 0 : i32
    %c0_i32_1 = arith.constant 0 : i32
    return %c0_i32, %c0_i32_0 : i32, i32
  }
  func.func @transform_1(%arg0: i32) -> (i32, i32) {
    %c0_i32 = arith.constant 0 : i32
    %c0_i32_0 = arith.constant 0 : i32
    return %arg0, %c0_i32 : i32, i32
  }
  func.func @transform_2(%arg0: i32) -> (i32, i32) {
    %c0_i32 = arith.constant 0 : i32
    %c0_i32_0 = arith.constant 0 : i32
    return %arg0, %c0_i32 : i32, i32
  }
}

</mosaic_0001>

<llo_original>
// kernel: tpu_custom_call.1
$region0: #{tpu_custom_call.1}
  #allocation0 [shape = 'u32[]', space=smem, size = 0x4, offset = 0x4, fixed_abs, tag = 'smem constant byte address 0x4 - core index']
  #allocation1 [shape = 'u32[72,128]{1,0:T(1,128)}', space=vmem, size = 0x9000, scoped, tag = 'internal scratch']
  #allocation2 [shape = 'f32[1,1]{1,0:T(1,128)S(6)}', space=smem, size = 0x200, scoped, tag = 'scoped memory for tpu_custom_call.1']
  %s0 = inlined_call_operand.<no memory space> [shape: f32[1,1], index: 0, kind: input, shape index: {}]
  %s1 = inlined_call_operand.hbm [shape: f32[16,128], index: 1, kind: input, shape index: {}]
  %s2 = inlined_call_operand.hbm [shape: f32[16,128], index: 2, kind: output, shape index: {}]
  %s3 = sld [smem:[#allocation0]]
  $region22: #{tpu_custom_call.1} parent=0
    _
  %s5 = ssub.s32 1, %s3
  %s6 = scalar_select 0, %s5, %s3
  %7 = sst [smem:[#allocation2]] %s0
  $region1: #{tpu_custom_call.1} parent=0
    #allocation3 [shape = 'u8[8192]{0}', space=vmem, size = 0x2000, scoped, tag = 'input window, operand 1, single buffered']
    #allocation4 [shape = 's32[1]{0}', space=sflag, size = 0x4, scoped, tag = 'scoped memory for tpu_custom_call.1']
    #allocation5 [shape = 's32[1]{0}', space=sflag, size = 0x4, scoped, tag = 'scoped memory for tpu_custom_call.1']
    #allocation6 [shape = 'u8[8192]{0}', space=vmem, size = 0x2000, scoped, tag = 'output window, operand 0, single buffered']
    %8 = vsyncpa [#allocation4], 0
    %9 = vsyncpa [#allocation5], 0
    // Predicated region
    $region2: #{tpu_custom_call.1} parent=1 // pred_check
      _
    $region3: #{tpu_custom_call.1} parent=1 // pred_check_branch
      %11 = sbr.rel (0) target = $region5
    $region4: #{tpu_custom_call.1} parent=1 // pred_region
      _
    $region5: #{tpu_custom_call.1} parent=1 // pred_fallthru
      _
    // Predicated region
    $region6: #{tpu_custom_call.1} parent=1 // pred_check
      _
    $region7: #{tpu_custom_call.1} parent=1 // pred_check_branch
      %13 = sbr.rel (0) target = $region9
    $region8: #{tpu_custom_call.1} parent=1 // pred_region
      %15 = vsyncadd [#allocation4], 0
      %s16 = sshll.u32 %s1, 4
      %s17 = int_to_ptr.hbm [resolvable:$true] %s16
      %s18 = sshll.u32 [#allocation3], 4
      %s19 = int_to_ptr.vmem [resolvable:$true] %s18
      %24 = dma.hbm_to_vmem [thread:$0]  %s17, 256, %s19, [#allocation4], 128, 128, 8
    $region9: #{tpu_custom_call.1} parent=1 // pred_fallthru
      _
    // Predicated region
    $region10: #{tpu_custom_call.1} parent=1 // pred_check
      _
    $region11: #{tpu_custom_call.1} parent=1 // pred_check_branch
      %26 = sbr.rel (0) target = $region13
    $region12: #{tpu_custom_call.1} parent=1 // pred_region
      %28 = dma.done [#allocation4], 256
    $region13: #{tpu_custom_call.1} parent=1 // pred_fallthru
      _
    %s29 = sld [smem:[#allocation2]]
    %v30 = vld [vmem:[#allocation3] sm:$0xff]
    %v31 = vld [vmem:[#allocation3 + $0x8] sm:$0xff]
    %v32 = vstv %s29
    %v33 = vmul.f32 %v30, %v32
    %v34 = vmul.f32 %v31, %v32
    %35 = vst [vmem:[#allocation6] sm:$0xff] %v33
    %36 = vst [vmem:[#allocation6 + $0x8] sm:$0xff] %v34
    // Predicated region
    $region14: #{tpu_custom_call.1} parent=1 // pred_check
      _
    $region15: #{tpu_custom_call.1} parent=1 // pred_check_branch
      %38 = sbr.rel (0) target = $region17
    $region16: #{tpu_custom_call.1} parent=1 // pred_region
      %40 = vsyncadd [#allocation5], 0
      %s41 = sshll.u32 [#allocation6], 4
      %s42 = int_to_ptr.vmem [resolvable:$true] %s41
      %s43 = sshll.u32 %s2, 4
      %s44 = int_to_ptr.hbm [resolvable:$true] %s43
      %49 = dma.vmem_to_hbm [thread:$0]  %s42, 256, %s44, [#allocation5], 128, 128, 8
    $region17: #{tpu_custom_call.1} parent=1 // pred_fallthru
      _
    // Predicated region
    $region18: #{tpu_custom_call.1} parent=1 // pred_check
      _
    $region19: #{tpu_custom_call.1} parent=1 // pred_check_branch
      %51 = sbr.rel (0) target = $region21
    $region20: #{tpu_custom_call.1} parent=1 // pred_region
      %53 = dma.done [#allocation5], 256
    $region21: #{tpu_custom_call.1} parent=1 // pred_fallthru
      _
    %54 = vsyncpa [#allocation4], 1
    %55 = vsyncpa [#allocation5], 1

</llo_original>
